<compile_context>
chip_gen: v7x
topology: tpu7x:2x2x1
jax: 0.10.0
libtpu: 0.0.40
codegen_flags: <defaults>
</compile_context>

<pallas_src>
import jax
import jax.numpy as jnp
from jax import lax
from jax.experimental import pallas as pl
from jax.experimental.pallas import tpu as pltpu

# Packed-parameter slab layout (rows of a (16, 128) f32 array):
#   rows 0..2,  cols 0:4 -> linear1 weight rows (w1 stored pre-transposed, [3, 4])
#   row  3,     cols 0:4 -> linear1 bias
#   row  4,     cols 0:4 -> batchnorm gamma
#   row  5,     cols 0:4 -> batchnorm beta
#   rows 8..11, cols 0:5 -> linear2 weight rows (w2 stored pre-transposed, [4, 5])
#   row  12,    cols 0:5 -> linear2 bias
_SLAB_SHAPE = (16, 128)
_EPS = 1e-5


def pack_params(w1, b1, gamma, beta, w2, b2):
    """Pack all module parameters into one lane-aligned f32 slab (done once)."""
    p = jnp.zeros(_SLAB_SHAPE, jnp.float32)
    p = p.at[0:3, 0:4].set(w1.astype(jnp.float32))
    p = p.at[3, 0:4].set(jnp.reshape(b1, (4,)).astype(jnp.float32))
    p = p.at[4, 0:4].set(jnp.reshape(gamma, (4,)).astype(jnp.float32))
    p = p.at[5, 0:4].set(jnp.reshape(beta, (4,)).astype(jnp.float32))
    p = p.at[8:12, 0:5].set(w2.astype(jnp.float32))
    p = p.at[12, 0:5].set(jnp.reshape(b2, (5,)).astype(jnp.float32))
    return p


def mlp_bn_kernel(x_ref, p_ref, o_ref):
    x = x_ref[...]                       # (N, 3) f32
    p = p_ref[...]                       # (16, 128) f32 (two vregs)

    # ---- Linear1 on the VPU: unrolled K=3 broadcast multiply-add ----
    h1 = p[3:4, 0:4]                     # bias1, (1, 4), broadcasts over batch
    for k in range(3):
        h1 = h1 + x[:, k:k + 1] * p[k:k + 1, 0:4]
    # h1: (N, 4)

    # ---- BatchNorm1d(4): training-mode batch statistics (biased variance) ----
    n = x.shape[0]
    inv_n = 1.0 / n
    mean = jnp.sum(h1, axis=0, keepdims=True) * inv_n
    centered = h1 - mean
    var = jnp.sum(centered * centered, axis=0, keepdims=True) * inv_n
    scale = p[4:5, 0:4] * lax.rsqrt(var + _EPS)      # gamma * inv_std, (1, 4)
    beta = p[5:6, 0:4]                               # (1, 4)

    # ---- Linear2 on the VPU with the BN affine folded per input column ----
    out = p[12:13, 0:5]                  # bias2, (1, 5)
    for k in range(4):
        hk = centered[:, k:k + 1] * scale[:, k:k + 1] + beta[:, k:k + 1]  # (N, 1)
        out = out + hk * p[8 + k:9 + k, 0:5]
    o_ref[...] = out.astype(o_ref.dtype)             # (N, 5)


def model_for_test_packed(x, packed_params):
    n = x.shape[0]
    vmem = pl.BlockSpec(memory_space=pltpu.MemorySpace.VMEM)
    cost = pl.CostEstimate(
        flops=2 * (n * 3 * 4 + n * 4 * 5) + 12 * n * 4,  # matmuls + BN arithmetic
        transcendentals=4,                               # 4 per-feature rsqrt
        bytes_accessed=x.size * 4 + packed_params.size * 4 + n * 5 * 4,
    )
    return pl.pallas_call(
        mlp_bn_kernel,
        out_shape=jax.ShapeDtypeStruct((n, 5), jnp.float32),
        in_specs=[vmem, vmem],
        out_specs=vmem,
        cost_estimate=cost,
    )(x, packed_params)


def model_for_test(x, w1, b1, gamma, beta, w2, b2):
    return model_for_test_packed(x, pack_params(w1, b1, gamma, beta, w2, b2))


def reference(x, w1, b1, gamma, beta, w2, b2):
    h1 = x @ w1 + b1
    mean = jnp.mean(h1, axis=0, keepdims=True)
    var = jnp.mean((h1 - mean) ** 2, axis=0, keepdims=True)
    hn = (h1 - mean) / jnp.sqrt(var + _EPS) * gamma + beta
    return hn @ w2 + b2


if __name__ == "__main__":
    key = jax.random.PRNGKey(0)
    k_x, k_w1, k_b1, k_w2, k_b2 = jax.random.split(key, 5)

    N = 8  # batch size
    x = jax.random.normal(k_x, (N, 3), dtype=jnp.float32)

    # Deterministic parameter init (shapes match nn.Linear / nn.BatchNorm1d).
    # Linear weights stored pre-transposed: [in_features, out_features].
    w1 = jax.random.normal(k_w1, (3, 4), dtype=jnp.float32) * 0.5
    b1 = jax.random.normal(k_b1, (1, 4), dtype=jnp.float32) * 0.1
    gamma = jnp.ones((1, 4), dtype=jnp.float32)   # BatchNorm1d weight init
    beta = jnp.zeros((1, 4), dtype=jnp.float32)   # BatchNorm1d bias init
    w2 = jax.random.normal(k_w2, (4, 5), dtype=jnp.float32) * 0.5
    b2 = jax.random.normal(k_b2, (1, 5), dtype=jnp.float32) * 0.1

    # Pack parameters ONCE (static data) so the per-call path is x + one slab DMA.
    packed = jax.block_until_ready(pack_params(w1, b1, gamma, beta, w2, b2))

    out = jax.block_until_ready(model_for_test_packed(x, packed))
    ref = reference(x, w1, b1, gamma, beta, w2, b2)

    assert out.shape == (N, 5), out.shape
    assert jnp.allclose(out, ref, atol=1e-5, rtol=1e-5), "mismatch vs reference"

    print("KERNEL_OK")
</pallas_src>

<mosaic_0001>
module attributes {stable_mosaic.version = 11 : i64} {
  func.func @mlp_bn_kernel(%arg0: memref<8x3xf32, #tpu.memory_space<vmem>>, %arg1: memref<16x128xf32, #tpu.memory_space<vmem>>, %arg2: memref<8x5xf32, #tpu.memory_space<vmem>>) attributes {dimension_semantics = [], scalar_prefetch = 0 : i64, scratch_operands = 0 : i64, tpu.core_type = #tpu.core_type<tc>} {
    %c0 = arith.constant 0 : index
    %c0_0 = arith.constant 0 : index
    %0 = vector.load %arg0[%c0, %c0_0] : memref<8x3xf32, #tpu.memory_space<vmem>>, vector<8x3xf32>
    %c0_1 = arith.constant 0 : index
    %c0_2 = arith.constant 0 : index
    %1 = vector.load %arg1[%c0_1, %c0_2] : memref<16x128xf32, #tpu.memory_space<vmem>>, vector<16x128xf32>
    %2 = vector.extract_strided_slice %1 {offsets = [3, 0], sizes = [1, 4], strides = [1, 1]} : vector<16x128xf32> to vector<1x4xf32>
    %3 = vector.extract_strided_slice %0 {offsets = [0, 0], sizes = [8, 1], strides = [1, 1]} : vector<8x3xf32> to vector<8x1xf32>
    %4 = vector.extract_strided_slice %1 {offsets = [0, 0], sizes = [1, 4], strides = [1, 1]} : vector<16x128xf32> to vector<1x4xf32>
    %5 = vector.broadcast %3 : vector<8x1xf32> to vector<8x4xf32>
    %6 = vector.broadcast %4 : vector<1x4xf32> to vector<8x4xf32>
    %7 = arith.mulf %5, %6 : vector<8x4xf32>
    %8 = vector.broadcast %2 : vector<1x4xf32> to vector<8x4xf32>
    %9 = arith.addf %8, %7 : vector<8x4xf32>
    %10 = vector.extract_strided_slice %0 {offsets = [0, 1], sizes = [8, 1], strides = [1, 1]} : vector<8x3xf32> to vector<8x1xf32>
    %11 = vector.extract_strided_slice %1 {offsets = [1, 0], sizes = [1, 4], strides = [1, 1]} : vector<16x128xf32> to vector<1x4xf32>
    %12 = vector.broadcast %10 : vector<8x1xf32> to vector<8x4xf32>
    %13 = vector.broadcast %11 : vector<1x4xf32> to vector<8x4xf32>
    %14 = arith.mulf %12, %13 : vector<8x4xf32>
    %15 = arith.addf %9, %14 : vector<8x4xf32>
    %16 = vector.extract_strided_slice %0 {offsets = [0, 2], sizes = [8, 1], strides = [1, 1]} : vector<8x3xf32> to vector<8x1xf32>
    %17 = vector.extract_strided_slice %1 {offsets = [2, 0], sizes = [1, 4], strides = [1, 1]} : vector<16x128xf32> to vector<1x4xf32>
    %18 = vector.broadcast %16 : vector<8x1xf32> to vector<8x4xf32>
    %19 = vector.broadcast %17 : vector<1x4xf32> to vector<8x4xf32>
    %20 = arith.mulf %18, %19 : vector<8x4xf32>
    %21 = arith.addf %15, %20 : vector<8x4xf32>
    %cst = arith.constant dense<0.000000e+00> : vector<4xf32>
    %22 = vector.multi_reduction <add>, %21, %cst [0] : vector<8x4xf32> to vector<4xf32>
    %23 = vector.shape_cast %22 : vector<4xf32> to vector<1x4xf32>
    %cst_3 = arith.constant 1.250000e-01 : f32
    %24 = vector.broadcast %cst_3 : f32 to vector<1x4xf32>
    %25 = arith.mulf %23, %24 : vector<1x4xf32>
    %26 = vector.broadcast %25 : vector<1x4xf32> to vector<8x4xf32>
    %27 = arith.subf %21, %26 : vector<8x4xf32>
    %28 = arith.mulf %27, %27 : vector<8x4xf32>
    %cst_4 = arith.constant dense<0.000000e+00> : vector<4xf32>
    %29 = vector.multi_reduction <add>, %28, %cst_4 [0] : vector<8x4xf32> to vector<4xf32>
    %30 = vector.shape_cast %29 : vector<4xf32> to vector<1x4xf32>
    %cst_5 = arith.constant 1.250000e-01 : f32
    %31 = vector.broadcast %cst_5 : f32 to vector<1x4xf32>
    %32 = arith.mulf %30, %31 : vector<1x4xf32>
    %33 = vector.extract_strided_slice %1 {offsets = [4, 0], sizes = [1, 4], strides = [1, 1]} : vector<16x128xf32> to vector<1x4xf32>
    %cst_6 = arith.constant 9.99999974E-6 : f32
    %34 = vector.broadcast %cst_6 : f32 to vector<1x4xf32>
    %35 = arith.addf %32, %34 : vector<1x4xf32>
    %36 = math.rsqrt %35 : vector<1x4xf32>
    %37 = arith.mulf %33, %36 : vector<1x4xf32>
    %38 = vector.extract_strided_slice %1 {offsets = [5, 0], sizes = [1, 4], strides = [1, 1]} : vector<16x128xf32> to vector<1x4xf32>
    %39 = vector.extract_strided_slice %1 {offsets = [12, 0], sizes = [1, 5], strides = [1, 1]} : vector<16x128xf32> to vector<1x5xf32>
    %40 = vector.extract_strided_slice %27 {offsets = [0, 0], sizes = [8, 1], strides = [1, 1]} : vector<8x4xf32> to vector<8x1xf32>
    %41 = vector.extract_strided_slice %37 {offsets = [0, 0], sizes = [1, 1], strides = [1, 1]} : vector<1x4xf32> to vector<1x1xf32>
    %42 = vector.broadcast %41 : vector<1x1xf32> to vector<8x1xf32>
    %43 = arith.mulf %40, %42 : vector<8x1xf32>
    %44 = vector.extract_strided_slice %38 {offsets = [0, 0], sizes = [1, 1], strides = [1, 1]} : vector<1x4xf32> to vector<1x1xf32>
    %45 = vector.broadcast %44 : vector<1x1xf32> to vector<8x1xf32>
    %46 = arith.addf %43, %45 : vector<8x1xf32>
    %47 = vector.extract_strided_slice %1 {offsets = [8, 0], sizes = [1, 5], strides = [1, 1]} : vector<16x128xf32> to vector<1x5xf32>
    %48 = vector.broadcast %46 : vector<8x1xf32> to vector<8x5xf32>
    %49 = vector.broadcast %47 : vector<1x5xf32> to vector<8x5xf32>
    %50 = arith.mulf %48, %49 : vector<8x5xf32>
    %51 = vector.broadcast %39 : vector<1x5xf32> to vector<8x5xf32>
    %52 = arith.addf %51, %50 : vector<8x5xf32>
    %53 = vector.extract_strided_slice %27 {offsets = [0, 1], sizes = [8, 1], strides = [1, 1]} : vector<8x4xf32> to vector<8x1xf32>
    %54 = vector.extract_strided_slice %37 {offsets = [0, 1], sizes = [1, 1], strides = [1, 1]} : vector<1x4xf32> to vector<1x1xf32>
    %55 = vector.broadcast %54 : vector<1x1xf32> to vector<8x1xf32>
    %56 = arith.mulf %53, %55 : vector<8x1xf32>
    %57 = vector.extract_strided_slice %38 {offsets = [0, 1], sizes = [1, 1], strides = [1, 1]} : vector<1x4xf32> to vector<1x1xf32>
    %58 = vector.broadcast %57 : vector<1x1xf32> to vector<8x1xf32>
    %59 = arith.addf %56, %58 : vector<8x1xf32>
    %60 = vector.extract_strided_slice %1 {offsets = [9, 0], sizes = [1, 5], strides = [1, 1]} : vector<16x128xf32> to vector<1x5xf32>
    %61 = vector.broadcast %59 : vector<8x1xf32> to vector<8x5xf32>
    %62 = vector.broadcast %60 : vector<1x5xf32> to vector<8x5xf32>
    %63 = arith.mulf %61, %62 : vector<8x5xf32>
    %64 = arith.addf %52, %63 : vector<8x5xf32>
    %65 = vector.extract_strided_slice %27 {offsets = [0, 2], sizes = [8, 1], strides = [1, 1]} : vector<8x4xf32> to vector<8x1xf32>
    %66 = vector.extract_strided_slice %37 {offsets = [0, 2], sizes = [1, 1], strides = [1, 1]} : vector<1x4xf32> to vector<1x1xf32>
    %67 = vector.broadcast %66 : vector<1x1xf32> to vector<8x1xf32>
    %68 = arith.mulf %65, %67 : vector<8x1xf32>
    %69 = vector.extract_strided_slice %38 {offsets = [0, 2], sizes = [1, 1], strides = [1, 1]} : vector<1x4xf32> to vector<1x1xf32>
    %70 = vector.broadcast %69 : vector<1x1xf32> to vector<8x1xf32>
    %71 = arith.addf %68, %70 : vector<8x1xf32>
    %72 = vector.extract_strided_slice %1 {offsets = [10, 0], sizes = [1, 5], strides = [1, 1]} : vector<16x128xf32> to vector<1x5xf32>
    %73 = vector.broadcast %71 : vector<8x1xf32> to vector<8x5xf32>
    %74 = vector.broadcast %72 : vector<1x5xf32> to vector<8x5xf32>
    %75 = arith.mulf %73, %74 : vector<8x5xf32>
    %76 = arith.addf %64, %75 : vector<8x5xf32>
    %77 = vector.extract_strided_slice %27 {offsets = [0, 3], sizes = [8, 1], strides = [1, 1]} : vector<8x4xf32> to vector<8x1xf32>
    %78 = vector.extract_strided_slice %37 {offsets = [0, 3], sizes = [1, 1], strides = [1, 1]} : vector<1x4xf32> to vector<1x1xf32>
    %79 = vector.broadcast %78 : vector<1x1xf32> to vector<8x1xf32>
    %80 = arith.mulf %77, %79 : vector<8x1xf32>
    %81 = vector.extract_strided_slice %38 {offsets = [0, 3], sizes = [1, 1], strides = [1, 1]} : vector<1x4xf32> to vector<1x1xf32>
    %82 = vector.broadcast %81 : vector<1x1xf32> to vector<8x1xf32>
    %83 = arith.addf %80, %82 : vector<8x1xf32>
    %84 = vector.extract_strided_slice %1 {offsets = [11, 0], sizes = [1, 5], strides = [1, 1]} : vector<16x128xf32> to vector<1x5xf32>
    %85 = vector.broadcast %83 : vector<8x1xf32> to vector<8x5xf32>
    %86 = vector.broadcast %84 : vector<1x5xf32> to vector<8x5xf32>
    %87 = arith.mulf %85, %86 : vector<8x5xf32>
    %88 = arith.addf %76, %87 : vector<8x5xf32>
    %c0_7 = arith.constant 0 : index
    %c0_8 = arith.constant 0 : index
    %89 = vector.load %arg2[%c0_7, %c0_8] : memref<8x5xf32, #tpu.memory_space<vmem>>, vector<8x5xf32>
    tpu.vector_store %arg2[%c0_7, %c0_8], %88 {strides = array<i32>} : memref<8x5xf32, #tpu.memory_space<vmem>>, vector<8x5xf32>,
    return
  }
}

</mosaic_0001>

<llo_original>
// kernel: tpu_custom_call.1
$region0: #{tpu_custom_call.1}
  #allocation0 [shape = 'u32[]', space=smem, size = 0x4, offset = 0x4, fixed_abs, tag = 'smem constant byte address 0x4 - core index']
  #allocation1 [shape = 'u32[144,128]{1,0:T(1,128)}', space=vmem, size = 0x12000, scoped, tag = 'internal scratch']
  %s0 = inlined_call_operand.vmem [shape: f32[8,3], index: 0, kind: input, shape index: {}]
  %s1 = inlined_call_operand.hbm [shape: f32[16,128], index: 1, kind: input, shape index: {}]
  %s2 = inlined_call_operand.hbm [shape: f32[8,5], index: 2, kind: output, shape index: {}]
  %s3 = sld [smem:[#allocation0]]
  $region22: #{tpu_custom_call.1} parent=0
    _
  %s5 = ssub.s32 1, %s3
  %s6 = scalar_select 0, %s5, %s3
  $region1: #{tpu_custom_call.1} parent=0
    #allocation2 [shape = 'u8[8192]{0}', space=vmem, size = 0x2000, scoped, tag = 'input window, operand 1, single buffered']
    #allocation3 [shape = 's32[1]{0}', space=sflag, size = 0x4, scoped, tag = 'scoped memory for tpu_custom_call.1']
    #allocation4 [shape = 's32[1]{0}', space=sflag, size = 0x4, scoped, tag = 'scoped memory for tpu_custom_call.1']
    #allocation5 [shape = 'u8[4096]{0}', space=vmem, size = 0x1000, scoped, tag = 'output window, operand 0, single buffered']
    %7 = vsyncpa [#allocation3], 0
    %8 = vsyncpa [#allocation4], 0
    // Predicated region
    $region2: #{tpu_custom_call.1} parent=1 // pred_check
      _
    $region3: #{tpu_custom_call.1} parent=1 // pred_check_branch
      %10 = sbr.rel (0) target = $region5
    $region4: #{tpu_custom_call.1} parent=1 // pred_region
      _
    $region5: #{tpu_custom_call.1} parent=1 // pred_fallthru
      _
    // Predicated region
    $region6: #{tpu_custom_call.1} parent=1 // pred_check
      _
    $region7: #{tpu_custom_call.1} parent=1 // pred_check_branch
      %12 = sbr.rel (0) target = $region9
    $region8: #{tpu_custom_call.1} parent=1 // pred_region
      %s14 = ssub.s32 256, 256
      %15 = vsyncadd [#allocation3], %s14
      %s16 = sshll.u32 [#allocation2], 4
      %s17 = int_to_ptr.vmem [resolvable:$true] %s16
      %22 = dma.hbm_to_vmem [thread:$0]  %s1, 256, %s17, [#allocation3], 128, 128, 8
    $region9: #{tpu_custom_call.1} parent=1 // pred_fallthru
      _
    // Predicated region
    $region10: #{tpu_custom_call.1} parent=1 // pred_check
      _
    $region11: #{tpu_custom_call.1} parent=1 // pred_check_branch
      %24 = sbr.rel (0) target = $region13
    $region12: #{tpu_custom_call.1} parent=1 // pred_region
      %25 = dma.done [#allocation3], 256
    $region13: #{tpu_custom_call.1} parent=1 // pred_fallthru
      _
    %v26 = vld [vmem:[%s0] sm:$0xff]
    %v27 = vld [vmem:[#allocation2] sm:$0xff]
    %v28 = vld [vmem:[#allocation2 + $0x8] sm:$0xff]
    %30 = vset.pattern.permute.xlu0 0
    %31 = vperm.xlu0 %30, %v26
    %v32 = vpop.permute.xlu0 %31
    %v34 = vlaneseq
    %v35 = vshrl.u32 %v34, 7
    %v36 = vsub.s32 0, %v35
    %v37 = vrot.slane %v27, %v36
    %v38 = vmul.f32 %v32, %v37
    %v39 = vlaneseq
    %v40 = vshrl.u32 %v39, 7
    %v41 = vsub.s32 3, %v40
    %v42 = vrot.slane %v27, %v41
    %v43 = vadd.f32 %v42, %v38
    %44 = vset.pattern.permute.xlu0 1
    %45 = vperm.xlu0 %44, %v26
    %v46 = vpop.permute.xlu0 %45
    %v48 = vlaneseq
    %v49 = vshrl.u32 %v48, 7
    %v50 = vsub.s32 1, %v49
    %v51 = vrot.slane %v27, %v50
    %v52 = vmul.f32 %v46, %v51
    %v53 = vadd.f32 %v43, %v52
    %54 = vset.pattern.permute.xlu0 2
    %55 = vperm.xlu0 %54, %v26
    %v56 = vpop.permute.xlu0 %55
    %v58 = vlaneseq
    %v59 = vshrl.u32 %v58, 7
    %v60 = vsub.s32 2, %v59
    %v61 = vrot.slane %v27, %v60
    %v62 = vmul.f32 %v56, %v61
    %v63 = vadd.f32 %v53, %v62
    %vm64 = vcmask 31744
    %v65 = vsel %vm64, %v63, 0.0
    %v66 = vrot.slane %v65, 4
    %v67 = vadd.f32 %v65, %v66
    %v68 = vrot.slane %v67, 2
    %v69 = vadd.f32 %v67, %v68
    %v70 = vrot.slane %v69, 1
    %v71 = vadd.f32 %v69, %v70
    %v72 = vmul.f32 %v71, 0.125
    %v73 = vsub.f32 %v63, %v72
    %v74 = vmul.f32 %v73, %v73
    %v75 = vsel %vm64, %v74, 0.0
    %v76 = vrot.slane %v75, 4
    %v77 = vadd.f32 %v75, %v76
    %v78 = vrot.slane %v77, 2
    %v79 = vadd.f32 %v77, %v78
    %v80 = vrot.slane %v79, 1
    %v81 = vadd.f32 %v79, %v80
    %v82 = vmul.f32 %v81, 0.125
    %v83 = vadd.f32 %v82, 1e-05
    %v84 = vrsqrt.pop %v83
    %v85 = vmul.f32 %v27, %v84
    %v86 = vlaneseq
    %v87 = vshrl.u32 %v86, 7
    %v88 = vsub.s32 4, %v87
    %v89 = vrot.slane %v85, %v88
    %v90 = vmul.f32 %v73, %v89
    %v91 = vlaneseq
    %v92 = vshrl.u32 %v91, 7
    %v93 = vsub.s32 5, %v92
    %v94 = vrot.slane %v27, %v93
    %v95 = vadd.f32 %v90, %v94
    %97 = vset.pattern.permute.xlu0 0
    %98 = vperm.xlu0 %97, %v95
    %v99 = vpop.permute.xlu0 %98
    %v101 = vlaneseq
    %v102 = vshrl.u32 %v101, 7
    %v103 = vsub.s32 0, %v102
    %v104 = vrot.slane %v28, %v103
    %v105 = vmul.f32 %v99, %v104
    %v106 = vlaneseq
    %v107 = vshrl.u32 %v106, 7
    %v108 = vsub.s32 4, %v107
    %v109 = vrot.slane %v28, %v108
    %v110 = vadd.f32 %v109, %v105
    %111 = vset.pattern.permute.xlu0 1
    %112 = vperm.xlu0 %111, %v95
    %v113 = vpop.permute.xlu0 %112
    %v115 = vlaneseq
    %v116 = vshrl.u32 %v115, 7
    %v117 = vsub.s32 1, %v116
    %v118 = vrot.slane %v28, %v117
    %v119 = vmul.f32 %v113, %v118
    %v120 = vadd.f32 %v110, %v119
    %121 = vset.pattern.permute.xlu0 2
    %122 = vperm.xlu0 %121, %v95
    %v123 = vpop.permute.xlu0 %122
    %v125 = vlaneseq
    %v126 = vshrl.u32 %v125, 7
    %v127 = vsub.s32 2, %v126
    %v128 = vrot.slane %v28, %v127
    %v129 = vmul.f32 %v123, %v128
    %v130 = vadd.f32 %v120, %v129
    %131 = vset.pattern.permute.xlu0 3
    %132 = vperm.xlu0 %131, %v95
    %v133 = vpop.permute.xlu0 %132
    %v135 = vlaneseq
    %v136 = vshrl.u32 %v135, 7
    %v137 = vsub.s32 3, %v136
    %v138 = vrot.slane %v28, %v137
    %v139 = vmul.f32 %v133, %v138
    %v140 = vadd.f32 %v130, %v139
    %vm141 = vcmask 39936
    %142 = vst.msk [vmem:[#allocation5] sm:$0xff] %vm141, %v140
    // Predicated region
    $region14: #{tpu_custom_call.1} parent=1 // pred_check
      _
    $region15: #{tpu_custom_call.1} parent=1 // pred_check_branch
      %144 = sbr.rel (0) target = $region17
    $region16: #{tpu_custom_call.1} parent=1 // pred_region
      %s146 = ssub.s32 128, 128
      %147 = vsyncadd [#allocation4], %s146
      %s149 = sshll.u32 [#allocation5], 4
      %s150 = int_to_ptr.vmem [resolvable:$true] %s149
      %152 = dma.vmem_to_hbm [thread:$0]  %s150, 128, %s2, [#allocation4]
    $region17: #{tpu_custom_call.1} parent=1 // pred_fallthru
      _
    // Predicated region
    $region18: #{tpu_custom_call.1} parent=1 // pred_check
      _
    $region19: #{tpu_custom_call.1} parent=1 // pred_check_branch
      %154 = sbr.rel (0) target = $region21
    $region20: #{tpu_custom_call.1} parent=1 // pred_region
      %155 = dma.done [#allocation4], 128
    $region21: #{tpu_custom_call.1} parent=1 // pred_fallthru
      _
    %156 = vsyncpa [#allocation3], 1
    %157 = vsyncpa [#allocation4], 1

</llo_original>
